<compile_context>
chip_gen: v6e
topology: v6e:2x2x1
jax: 0.10.0
libtpu: 0.0.40
codegen_flags: <defaults>
</compile_context>

<pallas_src>
import functools

import jax
import jax.numpy as jnp
from jax.experimental import pallas as pl
from jax.experimental.pallas import tpu as pltpu


def _label_smoothing_kernel(pred_ref, tgt_ref, loss_ref, *,
                            confidence, smooth_val, num_classes):
    """Writes per-row smoothed-CE losses for one (block_b, C) batch tile.

    row_loss = sum_c -true_dist[c] * logp[c]
             = -smooth * (sum_c z - C*lse) - (conf - smooth) * (z[target] - lse)
    with z = x - max(x), lse = log(sum exp(z)).  Avoids building logp or
    true_dist as full (TB, C) arrays.
    """
    x = pred_ref[...].astype(jnp.float32)                        # (TB, C)

    m = jnp.max(x, axis=-1, keepdims=True)                       # (TB, 1)
    z = x - m
    lse = jnp.log(jnp.sum(jnp.exp(z), axis=-1, keepdims=True))   # (TB, 1)
    sum_z = jnp.sum(z, axis=-1, keepdims=True)                   # (TB, 1)

    # z at the target class: one select + lane reduction (no scatter needed).
    cls_ids = jax.lax.broadcasted_iota(jnp.int32, x.shape, 1)    # (TB, C)
    z_tgt = jnp.sum(jnp.where(cls_ids == tgt_ref[...], z, 0.0),
                    axis=-1, keepdims=True)                      # (TB, 1)

    loss_ref[...] = (
        jnp.float32(-smooth_val) * (sum_z - jnp.float32(num_classes) * lse)
        - jnp.float32(confidence - smooth_val) * (z_tgt - lse)
    )


def _pick_block_b(B, C, itemsize, pred_vmem_budget_bytes=12 << 20,
                  max_rows=8192):
    """Largest batch tile whose double-buffered pred tile fits the budget."""
    rows = pred_vmem_budget_bytes // (2 * C * itemsize)          # 2 buffers
    rows = int(max(8, min(rows, max_rows)))
    if rows >= B:
        return B                      # single (or few) grid steps, full batch
    return max(8, (rows // 8) * 8)    # keep sublane-aligned


def label_smoothing_loss(pred, target, *, classes, smoothing=0.0,
                         block_b=None):
    """pred: (B, C) float, target: (B,) int class indices -> scalar f32."""
    B, C = pred.shape
    assert C == classes

    confidence = 1.0 - smoothing
    smooth_val = smoothing / (classes - 1)

    if block_b is None:
        block_b = _pick_block_b(B, C, jnp.dtype(pred.dtype).itemsize)

    # Pad batch so the grid tiles it exactly; padded rows are dropped below.
    num_blocks = pl.cdiv(B, block_b)
    B_pad = num_blocks * block_b
    if B_pad != B:
        pred = jnp.pad(pred, ((0, B_pad - B), (0, 0)))
        target = jnp.pad(target, (0, B_pad - B))
    tgt2d = target.astype(jnp.int32).reshape(B_pad, 1)

    kernel = functools.partial(
        _label_smoothing_kernel,
        confidence=confidence,
        smooth_val=smooth_val,
        num_classes=C,
    )

    # TODO(synk): for very large C (100K+ vocab), add a class-axis grid dim
    # with online logsumexp scratch instead of shrinking block_b.
    row_losses = pl.pallas_call(
        kernel,
        out_shape=jax.ShapeDtypeStruct((B_pad, 1), jnp.float32),
        grid_spec=pltpu.PrefetchScalarGridSpec(
            num_scalar_prefetch=0,
            grid=(num_blocks,),
            in_specs=[
                pl.BlockSpec((block_b, C), lambda i: (i, 0)),
                pl.BlockSpec((block_b, 1), lambda i: (i, 0)),
            ],
            out_specs=pl.BlockSpec((block_b, 1), lambda i: (i, 0)),
        ),
        compiler_params=pltpu.CompilerParams(
            dimension_semantics=("parallel",),   # independent per-block partials
            vmem_limit_bytes=32 << 20,
        ),
    )(pred, tgt2d)

    # Mean over the (unpadded) batch, divide exactly once.
    return jnp.sum(row_losses[:B, 0]) / jnp.float32(B)


def _reference(pred, target, classes, smoothing):
    confidence = 1.0 - smoothing
    logp = jax.nn.log_softmax(pred.astype(jnp.float32), axis=-1)
    true_dist = jnp.full_like(logp, smoothing / (classes - 1))
    true_dist = true_dist.at[jnp.arange(pred.shape[0]), target].set(confidence)
    return jnp.mean(jnp.sum(-true_dist * logp, axis=-1))


if __name__ == "__main__":
    B, C = 16, 32
    smoothing = 0.1

    key = jax.random.PRNGKey(0)
    kp, kt = jax.random.split(key)
    pred = jax.random.normal(kp, (B, C), dtype=jnp.float32)
    target = jax.random.randint(kt, (B,), 0, C, dtype=jnp.int32)

    loss = label_smoothing_loss(pred, target, classes=C, smoothing=smoothing)
    loss = jax.block_until_ready(loss)

    ref = _reference(pred, target, C, smoothing)
    assert jnp.allclose(loss, ref, rtol=1e-5, atol=1e-5), (loss, ref)

    print("KERNEL_OK")
</pallas_src>

<mosaic_0001>
module attributes {stable_mosaic.version = 11 : i64} {
  func.func @_label_smoothing_kernel(%arg0: i32, %arg1: memref<16x32xf32, #tpu.memory_space<vmem>>, %arg2: memref<16x1xi32, #tpu.memory_space<vmem>>, %arg3: memref<16x1xf32, #tpu.memory_space<vmem>>) attributes {dimension_semantics = [#tpu.dimension_semantics<parallel>], iteration_bounds = array<i64: 1>, scalar_prefetch = 0 : i64, scratch_operands = 0 : i64, tpu.core_type = #tpu.core_type<tc>, window_params = [{transform_indices = @transform_0, window_bounds = array<i64: 16, 32>}, {transform_indices = @transform_1, window_bounds = array<i64: 16, 1>}, {transform_indices = @transform_2, window_bounds = array<i64: 16, 1>}]} {
    %c0 = arith.constant 0 : index
    %c0_0 = arith.constant 0 : index
    %0 = vector.load %arg1[%c0, %c0_0] : memref<16x32xf32, #tpu.memory_space<vmem>>, vector<16x32xf32>
    %cst = arith.constant dense<0xFF800000> : vector<16xf32>
    %1 = vector.multi_reduction <maximumf>, %0, %cst [1] : vector<16x32xf32> to vector<16xf32>
    %2 = vector.shape_cast %1 : vector<16xf32> to vector<16x1xf32>
    %3 = vector.broadcast %2 : vector<16x1xf32> to vector<16x32xf32>
    %4 = arith.subf %0, %3 : vector<16x32xf32>
    %5 = math.exp %4 : vector<16x32xf32>
    %cst_1 = arith.constant dense<0.000000e+00> : vector<16xf32>
    %6 = vector.multi_reduction <add>, %5, %cst_1 [1] : vector<16x32xf32> to vector<16xf32>
    %7 = vector.shape_cast %6 : vector<16xf32> to vector<16x1xf32>
    %8 = math.log %7 : vector<16x1xf32>
    %cst_2 = arith.constant dense<0.000000e+00> : vector<16xf32>
    %9 = vector.multi_reduction <add>, %4, %cst_2 [1] : vector<16x32xf32> to vector<16xf32>
    %10 = vector.shape_cast %9 : vector<16xf32> to vector<16x1xf32>
    %11 = tpu.iota {dimensions = array<i32: 1>} : vector<16x32xi32>
    %c0_3 = arith.constant 0 : index
    %c0_4 = arith.constant 0 : index
    %12 = vector.load %arg2[%c0_3, %c0_4] : memref<16x1xi32, #tpu.memory_space<vmem>>, vector<16x1xi32>
    %13 = vector.broadcast %12 : vector<16x1xi32> to vector<16x32xi32>
    %14 = arith.cmpi eq, %11, %13 : vector<16x32xi32>
    %cst_5 = arith.constant 0.000000e+00 : f32
    %15 = vector.broadcast %cst_5 : f32 to vector<16x32xf32>
    %16 = arith.select %14, %4, %15 : vector<16x32xi1>, vector<16x32xf32>
    %cst_6 = arith.constant dense<0.000000e+00> : vector<16xf32>
    %17 = vector.multi_reduction <add>, %16, %cst_6 [1] : vector<16x32xf32> to vector<16xf32>
    %18 = vector.shape_cast %17 : vector<16xf32> to vector<16x1xf32>
    %cst_7 = arith.constant 3.200000e+01 : f32
    %19 = vector.broadcast %cst_7 : f32 to vector<16x1xf32>
    %20 = arith.mulf %19, %8 : vector<16x1xf32>
    %21 = arith.subf %10, %20 : vector<16x1xf32>
    %cst_8 = arith.constant -0.0032258064 : f32
    %22 = vector.broadcast %cst_8 : f32 to vector<16x1xf32>
    %23 = arith.mulf %22, %21 : vector<16x1xf32>
    %24 = arith.subf %18, %8 : vector<16x1xf32>
    %cst_9 = arith.constant 0.896774172 : f32
    %25 = vector.broadcast %cst_9 : f32 to vector<16x1xf32>
    %26 = arith.mulf %25, %24 : vector<16x1xf32>
    %27 = arith.subf %23, %26 : vector<16x1xf32>
    %c0_10 = arith.constant 0 : index
    %c0_11 = arith.constant 0 : index
    %28 = vector.load %arg3[%c0_10, %c0_11] : memref<16x1xf32, #tpu.memory_space<vmem>>, vector<16x1xf32>
    tpu.vector_store %arg3[%c0_10, %c0_11], %27 {strides = array<i32>} : memref<16x1xf32, #tpu.memory_space<vmem>>, vector<16x1xf32>,
    return
  }
  func.func @transform_0(%arg0: i32) -> (i32, i32) {
    %c0_i32 = arith.constant 0 : i32
    %c0_i32_0 = arith.constant 0 : i32
    return %arg0, %c0_i32 : i32, i32
  }
  func.func @transform_1(%arg0: i32) -> (i32, i32) {
    %c0_i32 = arith.constant 0 : i32
    %c0_i32_0 = arith.constant 0 : i32
    return %arg0, %c0_i32 : i32, i32
  }
  func.func @transform_2(%arg0: i32) -> (i32, i32) {
    %c0_i32 = arith.constant 0 : i32
    %c0_i32_0 = arith.constant 0 : i32
    return %arg0, %c0_i32 : i32, i32
  }
}

</mosaic_0001>

<llo_original>
// kernel: tpu_custom_call.1
$region0: #{tpu_custom_call.1}
  #allocation0 [shape = 'u32[]', space=smem, size = 0x4, offset = 0x4, fixed_abs, tag = 'smem constant byte address 0x4 - core index']
  #allocation1 [shape = 'u32[144,128]{1,0:T(1,128)}', space=vmem, size = 0x12000, scoped, tag = 'internal scratch']
  %s0 = inlined_call_operand.vmem [shape: f32[16,32], index: 0, kind: input, shape index: {}]
  %s1 = inlined_call_operand.vmem [shape: s32[16,1], index: 1, kind: input, shape index: {}]
  %s2 = inlined_call_operand.vmem [shape: f32[16,1], index: 2, kind: output, shape index: {}]
  %s3 = sld [smem:[#allocation0]]
  $region18: #{tpu_custom_call.1} parent=0
    _
  %s5 = ssub.s32 1, %s3
  %s6 = scalar_select 0, %s5, %s3
  // Predicated region
  $region2: #{tpu_custom_call.1} parent=0 // pred_check
    _
  $region3: #{tpu_custom_call.1} parent=0 // pred_check_branch
    %8 = sbr.rel (0) target = $region5
  $region4: #{tpu_custom_call.1} parent=0 // pred_region
    _
  $region5: #{tpu_custom_call.1} parent=0 // pred_fallthru
    _
  // Predicated region
  $region6: #{tpu_custom_call.1} parent=0 // pred_check
    _
  $region7: #{tpu_custom_call.1} parent=0 // pred_check_branch
    %10 = sbr.rel (0) target = $region9
  $region8: #{tpu_custom_call.1} parent=0 // pred_region
    _
  $region9: #{tpu_custom_call.1} parent=0 // pred_fallthru
    _
  %v11 = vld [vmem:[%s0] sm:$0xff]
  %v12 = vld [vmem:[%s0 + $0x8] sm:$0xff]
  %vm13 = vcmask 261120
  %v14 = vsel %vm13, %v11, -inf
  %15 = vmax.xlane.f32.xlu0 %v14
  %v16 = vpop.xlane.xlu0 %15
  %v17 = vsel %vm13, %v12, -inf
  %18 = vmax.xlane.f32.xlu0 %v17
  %v19 = vpop.xlane.xlu0 %18
  %v20 = vsub.f32 %v11, %v16
  %v21 = vsub.f32 %v12, %v19
  %v22 = vmul.f32 %v20, 1.442695
  %v23 = vpow.pop %v22
  %v24 = vmul.f32 %v21, 1.442695
  %v25 = vpow.pop %v24
  %v26 = vsel %vm13, %v23, 0.0
  %27 = vadd.xlane.f32.xlu0 %v26
  %v28 = vpop.xlane.xlu0 %27
  %v29 = vsel %vm13, %v25, 0.0
  %30 = vadd.xlane.f32.xlu0 %v29
  %v31 = vpop.xlane.xlu0 %30
  %v32 = vlog2.pop %v28
  %v33 = vmul.f32 %v32, 0.6931472
  %v34 = vlog2.pop %v31
  %v35 = vmul.f32 %v34, 0.6931472
  %v36 = vsel %vm13, %v20, 0.0
  %37 = vadd.xlane.f32.xlu0 %v36
  %v38 = vpop.xlane.xlu0 %37
  %v39 = vsel %vm13, %v21, 0.0
  %40 = vadd.xlane.f32.xlu0 %v39
  %v41 = vpop.xlane.xlu0 %40
  %v42 = vlaneseq
  %v43 = vand.u32 %v42, 127
  %v44 = vld [vmem:[%s1] sm:$0xff]
  %v45 = vld [vmem:[%s1 + $0x8] sm:$0xff]
  %46 = vset.pattern.permute.xlu0 0
  %47 = vperm.xlu0 %46, %v44
  %v48 = vpop.permute.xlu0 %47
  %49 = vset.pattern.permute.xlu0 0
  %50 = vperm.xlu0 %49, %v45
  %v51 = vpop.permute.xlu0 %50
  %vm52 = vcmp.eq.s32.totalorder %v43, %v48
  %vm53 = vcmp.eq.s32.totalorder %v43, %v51
  %v54 = vsel %vm52, %v20, 0.0
  %v55 = vsel %vm53, %v21, 0.0
  %v56 = vsel %vm13, %v54, 0.0
  %57 = vadd.xlane.f32.xlu0 %v56
  %v58 = vpop.xlane.xlu0 %57
  %v59 = vsel %vm13, %v55, 0.0
  %60 = vadd.xlane.f32.xlu0 %v59
  %v61 = vpop.xlane.xlu0 %60
  %v62 = vmul.f32 %v33, 32.0
  %v63 = vmul.f32 %v35, 32.0
  %v64 = vsub.f32 %v38, %v62
  %v65 = vsub.f32 %v41, %v63
  %v66 = vmul.f32 %v64, -0.0032258064
  %v67 = vmul.f32 %v65, -0.0032258064
  %v68 = vsub.f32 %v58, %v33
  %v69 = vsub.f32 %v61, %v35
  %v70 = vmul.f32 %v68, 0.8967742
  %v71 = vmul.f32 %v69, 0.8967742
  %v72 = vsub.f32 %v66, %v70
  %v73 = vsub.f32 %v67, %v71
  %vm74 = vcmask 7168
  %75 = vst.msk [vmem:[%s2] sm:$0xff] %vm74, %v72
  %76 = vst.msk [vmem:[%s2 + $0x8] sm:$0xff] %vm74, %v73
  // Predicated region
  $region10: #{tpu_custom_call.1} parent=0 // pred_check
    _
  $region11: #{tpu_custom_call.1} parent=0 // pred_check_branch
    %78 = sbr.rel (0) target = $region13
  $region12: #{tpu_custom_call.1} parent=0 // pred_region
    _
  $region13: #{tpu_custom_call.1} parent=0 // pred_fallthru
    _
  // Predicated region
  $region14: #{tpu_custom_call.1} parent=0 // pred_check
    _
  $region15: #{tpu_custom_call.1} parent=0 // pred_check_branch
    %80 = sbr.rel (0) target = $region17
  $region16: #{tpu_custom_call.1} parent=0 // pred_region
    _
  $region17: #{tpu_custom_call.1} parent=0 // pred_fallthru
    _

</llo_original>
